<compile_context>
chip_gen: v7x
topology: tpu7x:2x2x1
jax: 0.10.0
libtpu: 0.0.40
codegen_flags: <defaults>
</compile_context>

<pallas_src>
import functools

import jax
import jax.numpy as jnp
from jax.experimental import pallas as pl
from jax.experimental.pallas import tpu as pltpu


def _round_up(x: int, m: int) -> int:
    return ((x + m - 1) // m) * m


def _cdiv(a: int, b: int) -> int:
    return -(-a // b)


def _div_loss_kernel_exact(x_ref, o_ref):
    """Single N-block path: exact two-pass mean/variance (matches PyTorch)."""
    x = x_ref[...].astype(jnp.float32)
    inv_n = 1.0 / x.shape[0]                                      # static block N
    mu = jnp.sum(x, axis=0, keepdims=True) * inv_n                # (1, TC)
    var = jnp.sum((x - mu) ** 2, axis=0, keepdims=True) * inv_n   # biased var
    o_ref[...] = -jnp.sqrt(jnp.maximum(var, 1e-12))               # clamp.sqrt, negated


def _div_loss_kernel_acc(x_ref, o_ref, sum_ref, sq_ref, *, n_total, n_tile,
                         mask_rows):
    """N-tiled path: accumulate per-column sum / sum-of-squares in f32 scratch."""
    ni = pl.program_id(1)   # reduction (N) axis, innermost / "arbitrary"

    @pl.when(ni == 0)
    def _():
        sum_ref[...] = jnp.zeros_like(sum_ref)
        sq_ref[...] = jnp.zeros_like(sq_ref)

    x = x_ref[...].astype(jnp.float32)
    if mask_rows:
        # Last N block may be partial: zero rows beyond the real N.
        row = ni * n_tile + jax.lax.broadcasted_iota(jnp.int32, x.shape, 0)
        x = jnp.where(row < n_total, x, 0.0)
    sum_ref[...] += jnp.sum(x, axis=0, keepdims=True)
    sq_ref[...] += jnp.sum(x * x, axis=0, keepdims=True)

    @pl.when(ni == pl.num_programs(1) - 1)
    def _():
        inv_n = 1.0 / n_total
        mu = sum_ref[...] * inv_n
        var = sq_ref[...] * inv_n - mu * mu          # clamp below absorbs tiny <0
        o_ref[...] = -jnp.sqrt(jnp.maximum(var, 1e-12))


def div_loss(scores: jax.Array,
             *,
             target_block_bytes: int = 2 * 1024 * 1024) -> jax.Array:
    """Pallas implementation of DivLoss.forward(scores) for 2-D scores (N, C)."""
    N, C = scores.shape
    itemsize = jnp.dtype(scores.dtype).itemsize
    c128 = _round_up(C, 128)

    # Use the exact two-pass kernel whenever the whole reduction axis fits a
    # target-sized block with a comfortably wide (>=512) lane tile.
    single_n_block = N * 512 * itemsize <= target_block_bytes

    if single_n_block:
        n_tile, n_tiles = N, 1
    else:
        n_tile = max(8, (target_block_bytes // (512 * itemsize) // 8) * 8)
        n_tile = min(n_tile, _round_up(N, 8))
        n_tiles = _cdiv(N, n_tile)

    # Column tile: largest 128-multiple keeping the input block near the target.
    col_tile = (target_block_bytes // (max(n_tile, 1) * itemsize) // 128) * 128
    col_tile = max(128, min(col_tile, c128))
    # v7x megacore: if all of C would land in one block but C >= 256 lanes,
    # split it in two so the "parallel" column axis can shard across both TCs.
    if c128 >= 256 and col_tile >= c128:
        col_tile = _round_up(c128 // 2, 128)
    col_tiles = _cdiv(C, col_tile)

    cost = pl.CostEstimate(
        flops=3 * N * C + 4 * C,
        transcendentals=C,                                  # one sqrt per column
        bytes_accessed=N * C * itemsize + 4 * C,
    )

    if single_n_block:
        out = pl.pallas_call(
            _div_loss_kernel_exact,
            out_shape=jax.ShapeDtypeStruct((1, C), jnp.float32),
            grid_spec=pltpu.PrefetchScalarGridSpec(
                num_scalar_prefetch=0,
                grid=(col_tiles,),
                in_specs=[pl.BlockSpec((n_tile, col_tile), lambda j: (0, j))],
                out_specs=pl.BlockSpec((1, col_tile), lambda j: (0, j)),
            ),
            compiler_params=pltpu.CompilerParams(
                dimension_semantics=("parallel",)),
            cost_estimate=cost,
        )(scores)
    else:
        mask_rows = n_tiles * n_tile != N
        kernel = functools.partial(_div_loss_kernel_acc, n_total=N,
                                   n_tile=n_tile, mask_rows=mask_rows)
        out = pl.pallas_call(
            kernel,
            out_shape=jax.ShapeDtypeStruct((1, C), jnp.float32),
            grid_spec=pltpu.PrefetchScalarGridSpec(
                num_scalar_prefetch=0,
                grid=(col_tiles, n_tiles),   # reduction axis last / innermost
                in_specs=[pl.BlockSpec((n_tile, col_tile),
                                       lambda j, i: (i, j))],
                out_specs=pl.BlockSpec((1, col_tile), lambda j, i: (0, j)),
                scratch_shapes=[pltpu.VMEM((1, col_tile), jnp.float32),
                                pltpu.VMEM((1, col_tile), jnp.float32)],
            ),
            compiler_params=pltpu.CompilerParams(
                dimension_semantics=("parallel", "arbitrary")),
            cost_estimate=cost,
        )(scores)

    # Output is exactly (1, C): ragged last column block only writes back its
    # in-bounds columns, so a plain sum is the final loss.
    return jnp.sum(out)


def _div_loss_ref(scores: jax.Array) -> jax.Array:
    """Pure-JAX reference mirroring the PyTorch forward."""
    s = scores.astype(jnp.float32)
    mu = s.mean(0)
    var = ((s - mu) ** 2).mean(0, keepdims=True)
    std = jnp.sqrt(jnp.maximum(var, 1e-12))
    return -std.sum()


if __name__ == "__main__":
    key = jax.random.PRNGKey(0)
    k1, k2, k3 = jax.random.split(key, 3)

    # 1) Small, module-consistent shape (batch of per-sample score vectors).
    N, C = 16, 256
    scores = jax.random.normal(k1, (N, C), dtype=jnp.float32)
    loss = jax.block_until_ready(div_loss(scores))
    ref = jax.block_until_ready(_div_loss_ref(scores))
    assert jnp.allclose(loss, ref, rtol=1e-5, atol=1e-5), (loss, ref)

    # 2) Non-128-multiple C exercises the ragged-column (partial block) path
    #    without any wrapper-side padding.
    N2, C2 = 8, 200
    scores2 = jax.random.normal(k2, (N2, C2), dtype=jnp.float32)
    loss2 = jax.block_until_ready(div_loss(scores2))
    ref2 = jax.block_until_ready(_div_loss_ref(scores2))
    assert jnp.allclose(loss2, ref2, rtol=1e-5, atol=1e-5), (loss2, ref2)

    # 3) Force the N-tiled accumulating path (ragged N and ragged C) by using a
    #    tiny target block so the large-N code path is validated at small size.
    N3, C3 = 100, 384
    scores3 = jax.random.normal(k3, (N3, C3), dtype=jnp.float32)
    loss3 = jax.block_until_ready(div_loss(scores3, target_block_bytes=8 * 1024))
    ref3 = jax.block_until_ready(_div_loss_ref(scores3))
    assert jnp.allclose(loss3, ref3, rtol=1e-5, atol=1e-4), (loss3, ref3)

    print("KERNEL_OK")
</pallas_src>

<mosaic_0001>
module attributes {stable_mosaic.version = 11 : i64} {
  func.func @_div_loss_kernel_exact(%arg0: i32, %arg1: memref<16x128xf32, #tpu.memory_space<vmem>>, %arg2: memref<1x128xf32, #tpu.memory_space<vmem>>) attributes {dimension_semantics = [#tpu.dimension_semantics<parallel>], iteration_bounds = array<i64: 2>, scalar_prefetch = 0 : i64, scratch_operands = 0 : i64, tpu.core_type = #tpu.core_type<tc>, window_params = [{transform_indices = @transform_0, window_bounds = array<i64: 16, 128>}, {transform_indices = @transform_1, window_bounds = array<i64: 1, 128>}]} {
    %c0 = arith.constant 0 : index
    %c0_0 = arith.constant 0 : index
    %0 = vector.load %arg1[%c0, %c0_0] : memref<16x128xf32, #tpu.memory_space<vmem>>, vector<16x128xf32>
    %cst = arith.constant dense<0.000000e+00> : vector<128xf32>
    %1 = vector.multi_reduction <add>, %0, %cst [0] : vector<16x128xf32> to vector<128xf32>
    %2 = vector.shape_cast %1 : vector<128xf32> to vector<1x128xf32>
    %cst_1 = arith.constant 6.250000e-02 : f32
    %3 = vector.broadcast %cst_1 : f32 to vector<1x128xf32>
    %4 = arith.mulf %2, %3 : vector<1x128xf32>
    %5 = vector.broadcast %4 : vector<1x128xf32> to vector<16x128xf32>
    %6 = arith.subf %0, %5 : vector<16x128xf32>
    %7 = arith.mulf %6, %6 : vector<16x128xf32>
    %cst_2 = arith.constant dense<0.000000e+00> : vector<128xf32>
    %8 = vector.multi_reduction <add>, %7, %cst_2 [0] : vector<16x128xf32> to vector<128xf32>
    %9 = vector.shape_cast %8 : vector<128xf32> to vector<1x128xf32>
    %cst_3 = arith.constant 6.250000e-02 : f32
    %10 = vector.broadcast %cst_3 : f32 to vector<1x128xf32>
    %11 = arith.mulf %9, %10 : vector<1x128xf32>
    %cst_4 = arith.constant 9.99999996E-13 : f32
    %12 = vector.broadcast %cst_4 : f32 to vector<1x128xf32>
    %13 = arith.maximumf %11, %12 : vector<1x128xf32>
    %14 = math.sqrt %13 : vector<1x128xf32>
    %cst_5 = arith.constant 0.000000e+00 : f32
    %15 = vector.broadcast %cst_5 : f32 to vector<1x128xf32>
    %16 = arith.subf %15, %14 : vector<1x128xf32>
    %c0_6 = arith.constant 0 : index
    %c0_7 = arith.constant 0 : index
    %17 = vector.load %arg2[%c0_6, %c0_7] : memref<1x128xf32, #tpu.memory_space<vmem>>, vector<1x128xf32>
    tpu.vector_store %arg2[%c0_6, %c0_7], %16 {strides = array<i32>} : memref<1x128xf32, #tpu.memory_space<vmem>>, vector<1x128xf32>,
    return
  }
  func.func @transform_0(%arg0: i32) -> (i32, i32) {
    %c0_i32 = arith.constant 0 : i32
    %c0_i32_0 = arith.constant 0 : i32
    return %c0_i32, %arg0 : i32, i32
  }
  func.func @transform_1(%arg0: i32) -> (i32, i32) {
    %c0_i32 = arith.constant 0 : i32
    %c0_i32_0 = arith.constant 0 : i32
    return %c0_i32, %arg0 : i32, i32
  }
}

</mosaic_0001>

<llo_original>
// kernel: tpu_custom_call.1
$region0: #{tpu_custom_call.1}
  #allocation0 [shape = 'u32[]', space=smem, size = 0x4, offset = 0x4, fixed_abs, tag = 'smem constant byte address 0x4 - core index']
  #allocation1 [shape = 'u32[144,128]{1,0:T(1,128)}', space=vmem, size = 0x12000, scoped, tag = 'internal scratch']
  %s0 = inlined_call_operand.hbm [shape: f32[16,256], index: 0, kind: input, shape index: {}]
  %s1 = inlined_call_operand.hbm [shape: f32[1,256], index: 1, kind: output, shape index: {}]
  %s2 = sld [smem:[#allocation0]]
  $region41: #{tpu_custom_call.1} parent=0
    _
  %s4 = ssub.s32 1, %s2
  %s5 = scalar_select 0, %s4, %s2
  $region1: #{tpu_custom_call.1} parent=0
    #allocation2 [shape = 'u8[16384]{0}', space=vmem, size = 0x4000, scoped, tag = 'input window, operand 0']
    #allocation3 [shape = 's32[2]{0}', space=sflag, size = 0x8, scoped, tag = 'scoped memory for tpu_custom_call.1']
    #allocation4 [shape = 's32[2]{0}', space=sflag, size = 0x8, scoped, tag = 'scoped memory for tpu_custom_call.1']
    #allocation5 [shape = 'u8[1024]{0}', space=vmem, size = 0x400, scoped, tag = 'output window, operand 0']
    %6 = vsyncpa [#allocation3], 0
    %s7 = scalar_lea.sflag [#allocation3], 1
    %8 = vsyncpa %s7, 0
    %9 = vsyncpa [#allocation4], 0
    %s10 = scalar_lea.sflag [#allocation4], 1
    %11 = vsyncpa %s10, 0
    loop: start=0, step=1, limit=4
    $region2: #{tpu_custom_call.1} parent=1 // loop_pre_header
      _
    $region3: #{tpu_custom_call.1} parent=1 // loop_header
      %s13 = sphi 0, %s17
      %p14 = scmp.ge.s32.totalorder %s13, 4
      %s23 = sphi 0, %s25
      %s26 = sphi 0, %s23
      %s27 = sphi 0, %s26
      %s43 = sphi 0, %s27
      %s49 = sphi 0, %s51
      %s52 = sphi 0, %s49
      %s53 = sphi 0, %s52
      %s69 = sphi 0, %s53
    $region4: #{tpu_custom_call.1} parent=1 // loop_header_branch
      %16 = sbr.rel (%p14) target = $region8
    $region5: #{tpu_custom_call.1} parent=1 // loop_body
      %s18 = ssub.s32 %s13, 1
      %s19 = ssub.s32 %s13, 2
      %s20 = sadd.s32 %s13, 1
      %s21 = ssub.s32 %s13, %s20
      %p22 = scmp.eq.s32.totalorder %s21, 0
      %s24 = sadd.s32 %s23, 1
      %s25 = scalar_select %p22, %s23, %s24
      %p28 = pneg %p22
      %p29 = scmp.eq.s32.totalorder %s13, 1
      %p30 = por %p28, %p29
      %p31 = scmp.ne.s32.totalorder %s23, %s26
      %p32 = scmp.eq.s32.totalorder %s13, 0
      %p33 = por %p31, %p32
      %p34 = scmp.ne.s32.totalorder %s23, %s26
      %p35 = scmp.eq.s32.totalorder %s18, 1
      %p36 = por %p34, %p35
      %p37 = scmp.ne.s32.totalorder %s26, %s27
      %p38 = scmp.eq.s32.totalorder %s18, 0
      %p39 = por %p37, %p38
      %p40 = scmp.ne.s32.totalorder %s26, %s27
      %p41 = scmp.eq.s32.totalorder %s19, 1
      %p42 = por %p40, %p41
      %p44 = scmp.ne.s32.totalorder %s27, %s43
      %p45 = scmp.eq.s32.totalorder %s19, 0
      %p46 = por %p44, %p45
      %s47 = ssub.s32 %s13, %s20
      %p48 = scmp.eq.s32.totalorder %s47, 0
      %s50 = sadd.s32 %s49, 1
      %s51 = scalar_select %p48, %s49, %s50
      %p54 = pneg %p48
      %p55 = scmp.eq.s32.totalorder %s13, 1
      %p56 = por %p54, %p55
      %p57 = scmp.ne.s32.totalorder %s49, %s52
      %p58 = scmp.eq.s32.totalorder %s13, 0
      %p59 = por %p57, %p58
      %p60 = scmp.ne.s32.totalorder %s49, %s52
      %p61 = scmp.eq.s32.totalorder %s18, 1
      %p62 = por %p60, %p61
      %p63 = scmp.ne.s32.totalorder %s52, %s53
      %p64 = scmp.eq.s32.totalorder %s18, 0
      %p65 = por %p63, %p64
      %p66 = scmp.ne.s32.totalorder %s52, %s53
      %p67 = scmp.eq.s32.totalorder %s19, 1
      %p68 = por %p66, %p67
      %p70 = scmp.ne.s32.totalorder %s53, %s69
      %p71 = scmp.eq.s32.totalorder %s19, 0
      %p72 = por %p70, %p71
      %p73 = scmp.le.s32.totalorder 1, %s13
      %p74 = scmp.lt.s32.totalorder %s13, 3
      %p75 = pnand %p73, %p74
      %p76 = pneg %p75
      // Predicated region
      $region9: #{tpu_custom_call.1} parent=5 // pred_check
        _
      $region10: #{tpu_custom_call.1} parent=5 // pred_check_branch
        %78 = sbr.rel (%p75) target = $region12
      $region11: #{tpu_custom_call.1} parent=5 // pred_region
        %s79 = ssub.s32 %s13, 1
      $region12: #{tpu_custom_call.1} parent=5 // pred_fallthru
        _
      %p80 = scmp.lt.s32.totalorder %s13, 2
      // Predicated region
      $region13: #{tpu_custom_call.1} parent=5 // pred_check
        %p81 = pneg %p80
      $region14: #{tpu_custom_call.1} parent=5 // pred_check_branch
        %83 = sbr.rel (%p81) target = $region16
      $region15: #{tpu_custom_call.1} parent=5 // pred_region
        // Predicated region
        $region17: #{tpu_custom_call.1} parent=15 // pred_check
          %p84 = pneg %p33
        $region18: #{tpu_custom_call.1} parent=15 // pred_check_branch
          %86 = sbr.rel (%p84) target = $region20
        $region19: #{tpu_custom_call.1} parent=15 // pred_region
          %s87 = sand.u32 %s23, 1
          %s88 = scalar_lea.sflag [#allocation3], %s87
          %s89 = sand.u32 %s23, 1
          %s90 = smul.addr %s89, 16
          %s91 = scalar_lea.vmem [#allocation2], %s90
          %s93 = ssub.s32 256, 256
          %94 = vsyncadd %s88, %s93
          %s95 = smul.addr %s13, 128
          %s96 = scalar_lea.hbm %s0, %s95
          %s97 = sshll.u32 %s91, 4
          %s98 = int_to_ptr.vmem [resolvable:$true] %s97
          %103 = dma.hbm_to_vmem [thread:$0]  %s96, 256, %s98, %s88, 256, 128, 8
        $region20: #{tpu_custom_call.1} parent=15 // pred_fallthru
          _
      $region16: #{tpu_custom_call.1} parent=5 // pred_fallthru
        _
      %p104 = scmp.le.s32.totalorder 1, %s13
      %p105 = scmp.lt.s32.totalorder %s13, 3
      %p106 = pnand %p104, %p105
      %p107 = pneg %p106
      // Predicated region
      $region21: #{tpu_custom_call.1} parent=5 // pred_check
        _
      $region22: #{tpu_custom_call.1} parent=5 // pred_check_branch
        %109 = sbr.rel (%p106) target = $region24
      $region23: #{tpu_custom_call.1} parent=5 // pred_region
        %s110 = ssub.s32 %s13, 1
        %s111 = sand.u32 %s26, 1
        %s112 = scalar_lea.sflag [#allocation3], %s111
        %s113 = sand.u32 %s26, 1
        %s114 = smul.addr %s113, 16
        %s115 = scalar_lea.vmem [#allocation2], %s114
        // Predicated region
        $region25: #{tpu_custom_call.1} parent=23 // pred_check
          %p116 = pneg %p39
        $region26: #{tpu_custom_call.1} parent=23 // pred_check_branch
          %118 = sbr.rel (%p116) target = $region28
        $region27: #{tpu_custom_call.1} parent=23 // pred_region
          %119 = dma.done %s112, 256
        $region28: #{tpu_custom_call.1} parent=23 // pred_fallthru
          _
        %s120 = sand.u32 %s26, 1
        %s121 = scalar_lea.sflag [#allocation3], %s120
        %s122 = sand.u32 %s26, 1
        %s123 = smul.addr %s122, 16
        %s124 = scalar_lea.vmem [#allocation2], %s123
        %p125 = pneg %p39
        %p126 = pneg %p36
        %p127 = pneg %p65
        %p128 = pneg %p62
        %s129 = sand.u32 %s52, 1
        %s130 = scalar_lea.sflag [#allocation4], %s129
        %s131 = sand.u32 %s52, 1
        %s132 = scalar_lea.vmem [#allocation5], %s131
        %v133 = vld [vmem:[%s115] sm:$0xff]
        %v134 = vld [vmem:[%s115 + $0x8] sm:$0xff]
        %v135 = vadd.f32 %v133, %v134
        %v136 = vrot.slane %v135, 4
        %v137 = vadd.f32 %v135, %v136
        %v138 = vrot.slane %v137, 2
        %v139 = vadd.f32 %v137, %v138
        %v140 = vrot.slane %v139, 1
        %v141 = vadd.f32 %v139, %v140
        %v142 = vmul.f32 %v141, 0.0625
        %v143 = vsub.f32 %v133, %v142
        %v144 = vsub.f32 %v134, %v142
        %v145 = vmul.f32 %v143, %v143
        %v146 = vmul.f32 %v144, %v144
        %v147 = vadd.f32 %v145, %v146
        %v148 = vrot.slane %v147, 4
        %v149 = vadd.f32 %v147, %v148
        %v150 = vrot.slane %v149, 2
        %v151 = vadd.f32 %v149, %v150
        %v152 = vrot.slane %v151, 1
        %v153 = vadd.f32 %v151, %v152
        %v154 = vmul.f32 %v153, 0.0625
        %v155 = vmax.f32 %v154, 1e-12
        %v156 = vrsqrt.pop %v155
        %v157 = vmul.f32 %v155, %v156
        %vm158 = vcmp.eq.f32.partialorder %v155, inf
        %v159 = vsel %vm158, %v155, %v157
        %vm160 = vcmp.eq.f32.partialorder %v155, 0.0
        %v161 = vand.u32 %v155, 2147483648
        %v162 = vsel %vm160, %v161, %v159
        %v163 = vsub.f32 0.0, %v162
        %164 = vst [vmem:[%s132] sm:$0x1] %v163
        %s165 = sand.u32 %s52, 1
        %s166 = scalar_lea.sflag [#allocation4], %s165
        %s167 = sand.u32 %s52, 1
        %s168 = scalar_lea.vmem [#allocation5], %s167
        // Predicated region
        $region29: #{tpu_custom_call.1} parent=23 // pred_check
          %p169 = pneg %p62
        $region30: #{tpu_custom_call.1} parent=23 // pred_check_branch
          %171 = sbr.rel (%p169) target = $region32
        $region31: #{tpu_custom_call.1} parent=23 // pred_region
          %s173 = ssub.s32 16, 16
          %174 = vsyncadd %s166, %s173
          %s175 = smul.addr %s18, 16
          %s176 = scalar_lea.hbm %s1, %s175
          %s178 = sshll.u32 %s168, 4
          %s179 = int_to_ptr.vmem [resolvable:$true] %s178
          %181 = dma.vmem_to_hbm [thread:$0]  %s179, 16, %s176, %s166
        $region32: #{tpu_custom_call.1} parent=23 // pred_fallthru
          _
      $region24: #{tpu_custom_call.1} parent=5 // pred_fallthru
        _
      %p182 = scmp.le.s32.totalorder 2, %s13
      // Predicated region
      $region33: #{tpu_custom_call.1} parent=5 // pred_check
        %p183 = pneg %p182
      $region34: #{tpu_custom_call.1} parent=5 // pred_check_branch
        %185 = sbr.rel (%p183) target = $region36
      $region35: #{tpu_custom_call.1} parent=5 // pred_region
        %s186 = ssub.s32 %s13, 2
        // Predicated region
        $region37: #{tpu_custom_call.1} parent=35 // pred_check
          %p187 = pneg %p68
        $region38: #{tpu_custom_call.1} parent=35 // pred_check_branch
          %189 = sbr.rel (%p187) target = $region40
        $region39: #{tpu_custom_call.1} parent=35 // pred_region
          %s190 = sand.u32 %s53, 1
          %s191 = scalar_lea.sflag [#allocation4], %s190
          %s192 = sand.u32 %s53, 1
          %s193 = scalar_lea.vmem [#allocation5], %s192
          %194 = dma.done %s191, 16
        $region40: #{tpu_custom_call.1} parent=35 // pred_fallthru
          _
      $region36: #{tpu_custom_call.1} parent=5 // pred_fallthru
        _
    $region6: #{tpu_custom_call.1} parent=1 // loop_footer
      %s17 = sadd.s32 1, %s13
    $region7: #{tpu_custom_call.1} parent=1 // loop_footer_branch
      %12 = sbr.rel target = $region3
    $region8: #{tpu_custom_call.1} parent=1 // loop_exit
      _
    %195 = vsyncpa [#allocation3], 1
    %s196 = scalar_lea.sflag [#allocation3], 1
    %197 = vsyncpa %s196, 1
    %198 = vsyncpa [#allocation4], 1
    %s199 = scalar_lea.sflag [#allocation4], 1
    %200 = vsyncpa %s199, 1

</llo_original>
